<compile_context>
chip_gen: v7x
topology: tpu7x:2x2x1
jax: 0.10.0
libtpu: 0.0.40
codegen_flags: <defaults>
</compile_context>

<pallas_src>
import functools
import math

import jax
import jax.numpy as jnp
from jax import lax
from jax.experimental import pallas as pl
from jax.experimental.pallas import tpu as pltpu


def _round_up(x, m):
    return ((x + m - 1) // m) * m


def _mm_bias_kernel(x_ref, w_ref, b_ref, o_ref, *, compute_dtype):
    # x_ref: (tm, tk)  w_ref: (tk, tn) compute_dtype  b_ref: (1, tn) f32
    # o_ref: (tm, tn) f32 -- block index (i, j) is constant across k, so it is
    # VMEM-resident and doubles as the accumulator (no scratch needed).
    k = pl.program_id(2)

    @pl.when(k == 0)
    def _():
        # Fold the bias into the accumulator init (no separate finalize add).
        o_ref[...] = jnp.broadcast_to(b_ref[...], o_ref.shape).astype(o_ref.dtype)

    x = x_ref[...].astype(compute_dtype)
    # NN contraction: K is the last dim of x and the first dim of w, so the MXU
    # is fed directly with no in-kernel weight relayout / transpose.
    o_ref[...] += lax.dot_general(
        x, w_ref[...],
        dimension_numbers=(((1,), (0,)), ((), ())),
        preferred_element_type=jnp.float32)


def _mm_bias_masked_kernel(x_ref, w_ref, m_ref, b_ref, o_ref, *, compute_dtype):
    # Fused-mask variant: mask streamed as int8 (1 B/elem), applied in-kernel.
    k = pl.program_id(2)

    @pl.when(k == 0)
    def _():
        o_ref[...] = jnp.broadcast_to(b_ref[...], o_ref.shape).astype(o_ref.dtype)

    x = x_ref[...].astype(compute_dtype)
    w = w_ref[...] * m_ref[...].astype(compute_dtype)
    o_ref[...] += lax.dot_general(
        x, w,
        dimension_numbers=(((1,), (0,)), ((), ())),
        preferred_element_type=jnp.float32)


class CustomizedLinearTPU:
    """Forward-pass equivalent of the PyTorch CustomizedLinear module.

    weight: (F_out, F_in)  - nn.Linear layout
    bias:   (F_out,) or None
    mask:   (F_out, F_in) 0/1 connectivity or None (same layout as weight,
            i.e. already transposed like the module's self.mask parameter)
    fuse_mask: apply the mask to weight tiles inside the kernel (int8 stream)
            instead of folding it into the cached weights once at setup.
    compute_dtype: MXU operand dtype (bf16 default; accumulation is f32).
    """

    def __init__(self, weight, bias=None, mask=None, *, fuse_mask=False,
                 compute_dtype=jnp.bfloat16, tm=256, tn=512, tk=1024):
        weight = jnp.asarray(weight)
        F_out, F_in = weight.shape
        self.F_in, self.F_out = F_in, F_out
        self.compute_dtype = compute_dtype
        self.fuse_mask = bool(fuse_mask) and (mask is not None)

        if mask is not None and not self.fuse_mask:
            # Static mask: fold it into the cached weights once (no per-call
            # HBM pass, halves weight-side streaming vs a fused mask).
            weight = weight * jnp.asarray(mask).astype(weight.dtype)

        # Tile sizes: lane dims multiples of 128, capped at padded problem size.
        self.tm = tm
        n128 = _round_up(F_out, 128)
        tn = min(tn, n128)
        # v7x has 2 TensorCores sharded across 'parallel' grid axes; make sure
        # the N axis yields >= 2 blocks when possible so small-batch calls do
        # not leave one core idle (harmless on single-TC v5e / v6e).
        if tn >= n128 and n128 >= 256:
            tn = 128 * (-(-(n128 // 128) // 2))
        tk = min(tk, _round_up(F_in, 128))
        self.tn, self.tk = tn, tk

        Np = _round_up(F_out, tn)
        Kp = _round_up(F_in, tk)
        self.Np, self.Kp = Np, Kp

        # Static preprocessing done ONCE here (not per forward): transpose to
        # (F_in, F_out) for an NN matmul, pad to tile multiples, cast.
        wt = weight.T.astype(compute_dtype)
        self.w = jnp.pad(wt, ((0, Kp - F_in), (0, Np - F_out)))

        if bias is None:
            self.b = jnp.zeros((1, Np), jnp.float32)
        else:
            self.b = jnp.pad(jnp.asarray(bias, jnp.float32),
                             (0, Np - F_out)).reshape(1, Np)

        if self.fuse_mask:
            mt = jnp.asarray(mask).T.astype(jnp.int8)
            self.m = jnp.pad(mt, ((0, Kp - F_in), (0, Np - F_out)))
        else:
            self.m = None

    def __call__(self, x):
        B, F_in = x.shape
        assert F_in == self.F_in, "weight / input feature mismatch"
        tn, tk, Np, Kp = self.tn, self.tk, self.Np, self.Kp

        tm = min(self.tm, _round_up(B, 8))
        Bp = _round_up(B, tm)

        xp = x
        if Bp != B or Kp != F_in:
            xp = jnp.pad(x, ((0, Bp - B), (0, Kp - F_in)))

        grid = (Bp // tm, Np // tn, Kp // tk)

        x_spec = pl.BlockSpec((tm, tk), lambda i, j, k: (i, k))
        w_spec = pl.BlockSpec((tk, tn), lambda i, j, k: (k, j))
        b_spec = pl.BlockSpec((1, tn), lambda i, j, k: (0, j))
        o_spec = pl.BlockSpec((tm, tn), lambda i, j, k: (i, j))

        x_itemsize = xp.dtype.itemsize
        w_itemsize = self.w.dtype.itemsize

        if self.m is not None:
            kernel = functools.partial(_mm_bias_masked_kernel,
                                       compute_dtype=self.compute_dtype)
            m_spec = pl.BlockSpec((tk, tn), lambda i, j, k: (k, j))
            in_specs = [x_spec, w_spec, m_spec, b_spec]
            operands = (xp, self.w, self.m, self.b)
            m_tile_bytes = tk * tn                       # int8
            m_stream_bytes = Kp * Np * (Bp // tm)        # re-read per M block
        else:
            kernel = functools.partial(_mm_bias_kernel,
                                       compute_dtype=self.compute_dtype)
            in_specs = [x_spec, w_spec, b_spec]
            operands = (xp, self.w, self.b)
            m_tile_bytes = 0
            m_stream_bytes = 0

        # Actual streamed bytes: x is re-read Np/tn times, W (and mask / bias)
        # Bp/tm times across the 3-D grid; output written once.
        bytes_accessed = (
            Bp * Kp * x_itemsize * (Np // tn)
            + Kp * Np * w_itemsize * (Bp // tm)
            + m_stream_bytes
            + Np * 4 * (Bp // tm)
            + Bp * Np * 4)
        cost = pl.CostEstimate(flops=2 * Bp * Np * Kp, transcendentals=0,
                               bytes_accessed=int(bytes_accessed))

        # VMEM working set (double-buffered inputs + output tile, no scratch).
        # Explicit limit so large tiles compile on v5e (16 MiB scoped default)
        # while staying well under v7x's 64 MiB per-TC physical VMEM.
        tile_bytes = 2 * (tm * tk * x_itemsize + tk * tn * w_itemsize
                          + m_tile_bytes + tn * 4 + tm * tn * 4)
        vmem_limit = int(min(max(tile_bytes + (8 << 20), 32 << 20), 56 << 20))

        # TODO(synk): if a profile shows exposed DMA at k-step boundaries for
        # tiny-batch / weight-streaming-bound shapes, add
        # pipeline_mode=pl.Buffered(3) on w_spec (and m_spec).
        out = pl.pallas_call(
            kernel,
            out_shape=jax.ShapeDtypeStruct((Bp, Np), jnp.float32),
            grid_spec=pltpu.PrefetchScalarGridSpec(
                num_scalar_prefetch=0,
                grid=grid,
                in_specs=in_specs,
                out_specs=o_spec),
            compiler_params=pltpu.CompilerParams(
                dimension_semantics=("parallel", "parallel", "arbitrary"),
                vmem_limit_bytes=vmem_limit),
            cost_estimate=cost,
        )(*operands)

        return out[:B, :self.F_out].astype(x.dtype)


if __name__ == "__main__":
    # Deterministic synthetic parameters (mirrors init_params: U(-stdv, stdv)).
    B, F_in, F_out = 8, 32, 16
    key = jax.random.PRNGKey(0)
    kx, kw, kb, km = jax.random.split(key, 4)

    stdv = 1.0 / math.sqrt(F_in)
    x = jax.random.normal(kx, (B, F_in), dtype=jnp.float32)
    weight = jax.random.uniform(kw, (F_out, F_in), jnp.float32,
                                minval=-stdv, maxval=stdv)
    bias = jax.random.uniform(kb, (F_out,), jnp.float32,
                              minval=-stdv, maxval=stdv)
    # 0/1 connectivity mask in (F_out, F_in) layout (i.e. already transposed,
    # like the module's self.mask parameter).
    mask = (jax.random.uniform(km, (F_out, F_in)) > 0.5).astype(jnp.float32)

    y_ref = x @ (weight * mask).T + bias[None, :]

    # Default path: bf16 MXU operands, f32 accumulation, static mask folded
    # into the cached (pre-transposed, pre-padded) weight at setup.
    layer = CustomizedLinearTPU(weight, bias=bias, mask=mask)
    y = jax.block_until_ready(layer(x))
    assert y.shape == (B, F_out)
    assert jnp.allclose(y, y_ref, atol=5e-2, rtol=5e-2)

    # Exact f32 compute path.
    layer_f32 = CustomizedLinearTPU(weight, bias=bias, mask=mask,
                                    compute_dtype=jnp.float32)
    y32 = jax.block_until_ready(layer_f32(x))
    assert jnp.allclose(y32, y_ref, atol=2e-5, rtol=2e-5)

    # Fused-mask path: int8 mask streamed and applied to weight tiles in-kernel.
    layer_fused = CustomizedLinearTPU(weight, bias=bias, mask=mask,
                                      fuse_mask=True, compute_dtype=jnp.float32)
    y_fused = jax.block_until_ready(layer_fused(x))
    assert jnp.allclose(y_fused, y_ref, atol=2e-5, rtol=2e-5)

    # No mask / no bias path.
    layer_plain = CustomizedLinearTPU(weight, compute_dtype=jnp.float32)
    y_plain = jax.block_until_ready(layer_plain(x))
    assert jnp.allclose(y_plain, x @ weight.T, atol=2e-5, rtol=2e-5)

    print("KERNEL_OK")
</pallas_src>

<mosaic_0001>
module attributes {stable_mosaic.version = 11 : i64} {
  func.func @_mm_bias_kernel(%arg0: i32, %arg1: i32, %arg2: i32, %arg3: memref<8x128xf32, #tpu.memory_space<vmem>>, %arg4: memref<128x128xbf16, #tpu.memory_space<vmem>>, %arg5: memref<1x128xf32, #tpu.memory_space<vmem>>, %arg6: memref<8x128xf32, #tpu.memory_space<vmem>>) attributes {dimension_semantics = [#tpu.dimension_semantics<parallel>, #tpu.dimension_semantics<parallel>, #tpu.dimension_semantics<arbitrary>], iteration_bounds = array<i64: 1, 1, 1>, scalar_prefetch = 0 : i64, scratch_operands = 0 : i64, tpu.core_type = #tpu.core_type<tc>, window_params = [{transform_indices = @transform_0, window_bounds = array<i64: 8, 128>}, {transform_indices = @transform_1, window_bounds = array<i64: 128, 128>}, {transform_indices = @transform_2, window_bounds = array<i64: 1, 128>}, {transform_indices = @transform_3, window_bounds = array<i64: 8, 128>}]} {
    %c0_i32 = arith.constant 0 : i32
    %0 = arith.cmpi eq, %arg2, %c0_i32 : i32
    %1 = arith.extui %0 : i1 to i32
    %c0_i32_0 = arith.constant 0 : i32
    %2 = arith.cmpi ne, %1, %c0_i32_0 : i32
    scf.if %2 {
      %c0_8 = arith.constant 0 : index
      %c0_9 = arith.constant 0 : index
      %10 = vector.load %arg5[%c0_8, %c0_9] : memref<1x128xf32, #tpu.memory_space<vmem>>, vector<1x128xf32>
      %11 = vector.shape_cast %10 : vector<1x128xf32> to vector<1x128xf32>
      %12 = vector.broadcast %11 : vector<1x128xf32> to vector<8x128xf32>
      %c0_10 = arith.constant 0 : index
      %c0_11 = arith.constant 0 : index
      %13 = vector.load %arg6[%c0_10, %c0_11] : memref<8x128xf32, #tpu.memory_space<vmem>>, vector<8x128xf32>
      tpu.vector_store %arg6[%c0_10, %c0_11], %12 {strides = array<i32>} : memref<8x128xf32, #tpu.memory_space<vmem>>, vector<8x128xf32>,
    } else {
    }
    %c0 = arith.constant 0 : index
    %c0_1 = arith.constant 0 : index
    %3 = vector.load %arg3[%c0, %c0_1] : memref<8x128xf32, #tpu.memory_space<vmem>>, vector<8x128xf32>
    %4 = arith.truncf %3 : vector<8x128xf32> to vector<8x128xbf16>
    %c0_2 = arith.constant 0 : index
    %c0_3 = arith.constant 0 : index
    %5 = vector.load %arg6[%c0_2, %c0_3] : memref<8x128xf32, #tpu.memory_space<vmem>>, vector<8x128xf32>
    %c0_4 = arith.constant 0 : index
    %c0_5 = arith.constant 0 : index
    %6 = vector.load %arg4[%c0_4, %c0_5] : memref<128x128xbf16, #tpu.memory_space<vmem>>, vector<128x128xbf16>
    %cst = arith.constant dense<0.000000e+00> : vector<8x128xf32>
    %7 = tpu.matmul %4, %6, %cst {dimension_numbers = #tpu.dot_dimension_numbers<[1], [0], [0], [1], [0, 0, 1, 1], [], []>} : vector<8x128xbf16>, vector<128x128xbf16>, vector<8x128xf32> -> vector<8x128xf32>
    %8 = arith.addf %5, %7 : vector<8x128xf32>
    %c0_6 = arith.constant 0 : index
    %c0_7 = arith.constant 0 : index
    %9 = vector.load %arg6[%c0_6, %c0_7] : memref<8x128xf32, #tpu.memory_space<vmem>>, vector<8x128xf32>
    tpu.vector_store %arg6[%c0_6, %c0_7], %8 {strides = array<i32>} : memref<8x128xf32, #tpu.memory_space<vmem>>, vector<8x128xf32>,
    return
  }
  func.func @transform_0(%arg0: i32, %arg1: i32, %arg2: i32) -> (i32, i32) {
    %c0_i32 = arith.constant 0 : i32
    return %arg0, %arg2 : i32, i32
  }
  func.func @transform_1(%arg0: i32, %arg1: i32, %arg2: i32) -> (i32, i32) {
    %c0_i32 = arith.constant 0 : i32
    return %arg2, %arg1 : i32, i32
  }
  func.func @transform_2(%arg0: i32, %arg1: i32, %arg2: i32) -> (i32, i32) {
    %c0_i32 = arith.constant 0 : i32
    %c0_i32_0 = arith.constant 0 : i32
    return %c0_i32, %arg1 : i32, i32
  }
  func.func @transform_3(%arg0: i32, %arg1: i32, %arg2: i32) -> (i32, i32) {
    %c0_i32 = arith.constant 0 : i32
    return %arg0, %arg1 : i32, i32
  }
}

</mosaic_0001>

<llo_original>
// kernel: tpu_custom_call.1
$region0: #{tpu_custom_call.1}
  #allocation0 [shape = 'u32[]', space=smem, size = 0x4, offset = 0x4, fixed_abs, tag = 'smem constant byte address 0x4 - core index']
  #allocation1 [shape = 'u32[144,128]{1,0:T(1,128)}', space=vmem, size = 0x12000, scoped, tag = 'internal scratch']
  %s0 = inlined_call_operand.hbm [shape: f32[8,128], index: 0, kind: input, shape index: {}]
  %s1 = inlined_call_operand.hbm [shape: bf16[128,128], index: 1, kind: input, shape index: {}]
  %s2 = inlined_call_operand.vmem [shape: f32[1,128], index: 2, kind: input, shape index: {}]
  %s3 = inlined_call_operand.hbm [shape: f32[8,128], index: 3, kind: output, shape index: {}]
  %s4 = sld [smem:[#allocation0]]
  $region34: #{tpu_custom_call.1} parent=0
    _
  %s6 = ssub.s32 1, %s4
  %s7 = scalar_select 0, %s6, %s4
  $region1: #{tpu_custom_call.1} parent=0
    #allocation2 [shape = 'u8[4096]{0}', space=vmem, size = 0x1000, scoped, tag = 'input window, operand 0, single buffered']
    #allocation3 [shape = 's32[1]{0}', space=sflag, size = 0x4, scoped, tag = 'scoped memory for tpu_custom_call.1']
    #allocation4 [shape = 's32[1]{0}', space=sflag, size = 0x4, scoped, tag = 'scoped memory for tpu_custom_call.1']
    #allocation5 [shape = 'u8[32768]{0}', space=vmem, size = 0x8000, scoped, tag = 'input window, operand 1, single buffered']
    #allocation6 [shape = 's32[1]{0}', space=sflag, size = 0x4, scoped, tag = 'scoped memory for tpu_custom_call.1']
    #allocation7 [shape = 'u8[4096]{0}', space=vmem, size = 0x1000, scoped, tag = 'output window, operand 0, single buffered']
    %8 = vsyncpa [#allocation3], 0
    %9 = vsyncpa [#allocation6], 0
    %10 = vsyncpa [#allocation4], 0
    // Predicated region
    $region2: #{tpu_custom_call.1} parent=1 // pred_check
      _
    $region3: #{tpu_custom_call.1} parent=1 // pred_check_branch
      %12 = sbr.rel (0) target = $region5
    $region4: #{tpu_custom_call.1} parent=1 // pred_region
      %s14 = ssub.s32 128, 128
      %15 = vsyncadd [#allocation3], %s14
      %s17 = sshll.u32 [#allocation2], 4
      %s18 = int_to_ptr.vmem [resolvable:$true] %s17
      %20 = dma.hbm_to_vmem [thread:$0]  %s0, 128, %s18, [#allocation3]
    $region5: #{tpu_custom_call.1} parent=1 // pred_fallthru
      _
    // Predicated region
    $region6: #{tpu_custom_call.1} parent=1 // pred_check
      _
    $region7: #{tpu_custom_call.1} parent=1 // pred_check_branch
      %22 = sbr.rel (0) target = $region9
    $region8: #{tpu_custom_call.1} parent=1 // pred_region
      %s24 = ssub.s32 1024, 1024
      %25 = vsyncadd [#allocation6], %s24
      %s26 = sshll.u32 [#allocation5], 4
      %s27 = int_to_ptr.vmem [resolvable:$true] %s26
      %32 = dma.hbm_to_vmem [thread:$0]  %s1, 1024, %s27, [#allocation6], 64, 64, 4
    $region9: #{tpu_custom_call.1} parent=1 // pred_fallthru
      _
    // Predicated region
    $region10: #{tpu_custom_call.1} parent=1 // pred_check
      _
    $region11: #{tpu_custom_call.1} parent=1 // pred_check_branch
      %34 = sbr.rel (0) target = $region13
    $region12: #{tpu_custom_call.1} parent=1 // pred_region
      _
    $region13: #{tpu_custom_call.1} parent=1 // pred_fallthru
      _
    // Predicated region
    $region14: #{tpu_custom_call.1} parent=1 // pred_check
      _
    $region15: #{tpu_custom_call.1} parent=1 // pred_check_branch
      %36 = sbr.rel (0) target = $region17
    $region16: #{tpu_custom_call.1} parent=1 // pred_region
      %37 = dma.done [#allocation3], 128
    $region17: #{tpu_custom_call.1} parent=1 // pred_fallthru
      _
    // Predicated region
    $region18: #{tpu_custom_call.1} parent=1 // pred_check
      _
    $region19: #{tpu_custom_call.1} parent=1 // pred_check_branch
      %39 = sbr.rel (0) target = $region21
    $region20: #{tpu_custom_call.1} parent=1 // pred_region
      %40 = dma.done [#allocation6], 1024
    $region21: #{tpu_custom_call.1} parent=1 // pred_fallthru
      _
    %p42 = scmp.eq.s32.totalorder 0, 0
    // Predicated region
    $region22: #{tpu_custom_call.1} parent=1 // pred_check
      %p43 = pneg %p42
    $region23: #{tpu_custom_call.1} parent=1 // pred_check_branch
      %45 = sbr.rel (%p43) target = $region25
    $region24: #{tpu_custom_call.1} parent=1 // pred_region
      %v46 = vld [vmem:[%s2] sm:$0x1]
      %v48 = vlaneseq
      %v49 = vshrl.u32 %v48, 7
      %v50 = vsub.s32 0, %v49
      %v51 = vrot.slane %v46, %v50
      %53 = vst [vmem:[#allocation7] sm:$0xff] %v51
    $region25: #{tpu_custom_call.1} parent=1 // pred_fallthru
      _
    %v54 = vld [vmem:[#allocation2] sm:$0xff]
    %v55 = vpack.c.bf16 %v54, %v54
    %v56 = vld [vmem:[#allocation7] sm:$0xff]
    %v57 = vld [vmem:[#allocation5] sm:$0xf]
    %v58 = vld [vmem:[#allocation5 + $0x4] sm:$0xf]
    %v59 = vld [vmem:[#allocation5 + $0x8] sm:$0xf]
    %v60 = vld [vmem:[#allocation5 + $0xc] sm:$0xf]
    %v61 = vld [vmem:[#allocation5 + $0x10] sm:$0xf]
    %v62 = vld [vmem:[#allocation5 + $0x14] sm:$0xf]
    %v63 = vld [vmem:[#allocation5 + $0x18] sm:$0xf]
    %v64 = vld [vmem:[#allocation5 + $0x1c] sm:$0xf]
    %v65 = vld [vmem:[#allocation5 + $0x20] sm:$0xf]
    %v66 = vld [vmem:[#allocation5 + $0x24] sm:$0xf]
    %v67 = vld [vmem:[#allocation5 + $0x28] sm:$0xf]
    %v68 = vld [vmem:[#allocation5 + $0x2c] sm:$0xf]
    %v69 = vld [vmem:[#allocation5 + $0x30] sm:$0xf]
    %v70 = vld [vmem:[#allocation5 + $0x34] sm:$0xf]
    %v71 = vld [vmem:[#allocation5 + $0x38] sm:$0xf]
    %v72 = vld [vmem:[#allocation5 + $0x3c] sm:$0xf]
    %v89 = vunpack.c.l.b16 %v57
    %v90 = vunpack.c.l.b16 %v58
    %v91 = vunpack.c.l.b16 %v59
    %v92 = vunpack.c.l.b16 %v60
    %v93 = vunpack.c.l.b16 %v61
    %v94 = vunpack.c.l.b16 %v62
    %v95 = vunpack.c.l.b16 %v63
    %v96 = vunpack.c.l.b16 %v64
    %v97 = vunpack.c.l.b16 %v65
    %v98 = vunpack.c.l.b16 %v66
    %v99 = vunpack.c.l.b16 %v67
    %v100 = vunpack.c.l.b16 %v68
    %v101 = vunpack.c.l.b16 %v69
    %v102 = vunpack.c.l.b16 %v70
    %v103 = vunpack.c.l.b16 %v71
    %v104 = vunpack.c.l.b16 %v72
    %v105 = vpack.c.b16 %v90, %v89
    %v106 = vpack.c.b16 %v92, %v91
    %v107 = vpack.c.b16 %v94, %v93
    %v108 = vpack.c.b16 %v96, %v95
    %v109 = vpack.c.b16 %v98, %v97
    %v110 = vpack.c.b16 %v100, %v99
    %v111 = vpack.c.b16 %v102, %v101
    %v112 = vpack.c.b16 %v104, %v103
    %121 = vmatprep.subr.bf16.mxu0 0
    %122 = vmatpush1.bf16.msra.mxu0 %v105
    %123 = vmatprep.subr.bf16.mxu0 0
    %124 = vmatpush1.bf16.msra.mxu0 %v106
    %125 = vmatprep.subr.bf16.mxu0 0
    %126 = vmatpush1.bf16.msra.mxu0 %v107
    %127 = vmatprep.subr.bf16.mxu0 0
    %128 = vmatpush1.bf16.msra.mxu0 %v108
    %129 = vmatprep.subr.bf16.mxu0 0
    %130 = vmatpush1.bf16.msra.mxu0 %v109
    %131 = vmatprep.subr.bf16.mxu0 0
    %132 = vmatpush1.bf16.msra.mxu0 %v110
    %133 = vmatprep.subr.bf16.mxu0 0
    %134 = vmatpush1.bf16.msra.mxu0 %v111
    %135 = vmatprep.subr.bf16.mxu0 0
    %136 = vmatpush1.bf16.msra.mxu0 %v112
    %137 = vmatprep.subr.bf16.mxu0 0
    %138 = vmatpush1.bf16.msra.mxu0 0
    %139 = vmatprep.subr.bf16.mxu0 0
    %140 = vmatpush1.bf16.msra.mxu0 0
    %141 = vmatprep.subr.bf16.mxu0 0
    %142 = vmatpush1.bf16.msra.mxu0 0
    %143 = vmatprep.subr.bf16.mxu0 0
    %144 = vmatpush1.bf16.msra.mxu0 0
    %145 = vmatprep.subr.bf16.mxu0 0
    %146 = vmatpush1.bf16.msra.mxu0 0
    %147 = vmatprep.subr.bf16.mxu0 0
    %148 = vmatpush1.bf16.msra.mxu0 0
    %149 = vmatprep.subr.bf16.mxu0 0
    %150 = vmatpush1.bf16.msra.mxu0 0
    %151 = vmatprep.subr.bf16.mxu0 0
    %152 = vmatpush1.bf16.msra.mxu0 0
    %153 = vmatprep.mubr.bf16.mxu0 0
    %154 = vmatmul.mubr.bf16.gmra.mrb[0].mxu0 %v55
    %v155 = vpop.f32.mrb[0].mxu0
    %v156 = vadd.f32 0.0, %v155
    %v157 = vpop.f32.mrb[0].mxu0
    %v158 = vpop.f32.mrb[0].mxu0
    %v159 = vpop.f32.mrb[0].mxu0
    %160 = vdwg.mxu0
    %v161 = vadd.f32 %v56, %v156
    %162 = vst [vmem:[#allocation7] sm:$0xff] %v161
    // Predicated region
    $region26: #{tpu_custom_call.1} parent=1 // pred_check
      _
    $region27: #{tpu_custom_call.1} parent=1 // pred_check_branch
      %164 = sbr.rel (0) target = $region29
    $region28: #{tpu_custom_call.1} parent=1 // pred_region
      %s166 = ssub.s32 128, 128
      %167 = vsyncadd [#allocation4], %s166
      %s169 = sshll.u32 [#allocation7], 4
      %s170 = int_to_ptr.vmem [resolvable:$true] %s169
      %172 = dma.vmem_to_hbm [thread:$0]  %s170, 128, %s3, [#allocation4]
    $region29: #{tpu_custom_call.1} parent=1 // pred_fallthru
      _
    // Predicated region
    $region30: #{tpu_custom_call.1} parent=1 // pred_check
      _
    $region31: #{tpu_custom_call.1} parent=1 // pred_check_branch
      %174 = sbr.rel (0) target = $region33
    $region32: #{tpu_custom_call.1} parent=1 // pred_region
      %175 = dma.done [#allocation4], 128
    $region33: #{tpu_custom_call.1} parent=1 // pred_fallthru
      _
    %176 = vsyncpa [#allocation3], 1
    %177 = vsyncpa [#allocation6], 1
    %178 = vsyncpa [#allocation4], 1

</llo_original>
